<compile_context>
chip_gen: v5e
topology: v5e:2x2
jax: 0.10.0
libtpu: 0.0.40
codegen_flags: <defaults>
</compile_context>

<pallas_src>
import jax
import jax.numpy as jnp
from jax import lax
from jax.experimental import pallas as pl
from jax.experimental.pallas import tpu as pltpu


def _make_vdn_kernel(rows_per_block: int, inner_rows: int):
    assert rows_per_block % inner_rows == 0
    n_chunks = rows_per_block // inner_rows

    def kernel(q_ref, o_ref):
        # q_ref: (rows_per_block, A) -- natural layout: rows on sublanes, agents on lanes.
        # o_ref: (rows_per_block, 1)
        if n_chunks == 1:
            x = q_ref[...].astype(jnp.float32)
            o_ref[...] = jnp.sum(x, axis=-1, keepdims=True).astype(o_ref.dtype)
            return

        def chunk(c, carry):
            r = pl.multiple_of(c * inner_rows, inner_rows)
            x = q_ref[pl.ds(r, inner_rows), :].astype(jnp.float32)
            s = jnp.sum(x, axis=-1, keepdims=True)   # single lane-axis reduce per chunk
            o_ref[pl.ds(r, inner_rows), :] = s.astype(o_ref.dtype)
            return carry

        lax.fori_loop(0, n_chunks, chunk, 0, unroll=min(n_chunks, 8))

    return kernel


def _row_tile(n_rows: int, n_agents: int, itemsize: int) -> int:
    """Pick the row-tile size (multiple of 8/128, or == n_rows for tiny inputs)."""
    if n_rows < 8:
        return n_rows                       # block == full dim: always legal
    if n_rows < 128:
        return (n_rows // 8) * 8            # partial edge block handles the tail
    # VMEM block buffers are (8,128)-lane-tiled, so a (tn, A) block occupies
    # tn * ceil(A/128)*128 * bytes regardless of how small A is.  Budget ~4 MiB
    # per (input + output) buffer pair -> ~8-9 MiB double-buffered, safe on all
    # of v5e/v6e (32 MiB scoped default) and v7x (64 MiB physical).
    lanes_in = -(-n_agents // 128) * 128
    bytes_per_row = (lanes_in + 128) * max(itemsize, 4)
    budget = 4 << 20
    tn = max(128, (budget // bytes_per_row) // 128 * 128)
    return min(tn, (n_rows // 128) * 128)


def vdn_mixer(agent_qs: jax.Array) -> jax.Array:
    """VDNMixer.forward: sum agent Q-values over the agent axis (dim=2), keepdim=True."""
    B, T, A = agent_qs.shape
    N = B * T

    # Free layout plumbing only: contiguous reshape, no transpose, no pad.
    x = agent_qs.reshape(N, A)

    tn = _row_tile(N, A, x.dtype.itemsize)
    inner = 128 if tn % 128 == 0 else tn
    grid = pl.cdiv(N, tn)

    out = pl.pallas_call(
        _make_vdn_kernel(tn, inner),
        out_shape=jax.ShapeDtypeStruct((N, 1), agent_qs.dtype),
        grid_spec=pl.GridSpec(
            grid=(grid,),
            in_specs=[pl.BlockSpec((tn, A), lambda i: (i, 0))],
            out_specs=pl.BlockSpec((tn, 1), lambda i: (i, 0)),
        ),
        compiler_params=pltpu.CompilerParams(
            dimension_semantics=("parallel",),
        ),
        cost_estimate=pl.CostEstimate(
            flops=max(A - 1, 0) * N,
            transcendentals=0,
            bytes_accessed=(A + 1) * N * agent_qs.dtype.itemsize,
        ),
    )(x)

    return out.reshape(B, T, 1)


if __name__ == "__main__":
    # VDNMixer has no parameters (empty __init__), so nothing to initialize.
    key = jax.random.PRNGKey(0)

    # Small, deterministic example consistent with the module's forward.
    B, T, A = 2, 8, 4  # batch, timesteps, n_agents
    agent_qs = jax.random.normal(key, (B, T, A), dtype=jnp.float32)
    out = jax.block_until_ready(vdn_mixer(agent_qs))
    ref = jnp.sum(agent_qs, axis=2, keepdims=True)
    assert out.shape == (B, T, 1), out.shape
    assert jnp.allclose(out, ref, atol=1e-6), "mismatch vs reference"

    # Odd sizes: exercises the cdiv grid + partial edge block (no pad) path.
    B2, T2, A2 = 3, 50, 5
    qs2 = jax.random.normal(jax.random.PRNGKey(1), (B2, T2, A2), jnp.float32)
    out2 = jax.block_until_ready(vdn_mixer(qs2))
    ref2 = jnp.sum(qs2, axis=2, keepdims=True)
    assert out2.shape == (B2, T2, 1), out2.shape
    assert jnp.allclose(out2, ref2, atol=1e-5), "mismatch vs reference (odd shapes)"

    # Larger (still small) case: exercises multi-block grid + in-kernel
    # fori_loop chunking path (tn=4096, grid=2, 32 chunks).
    B3, T3, A3 = 64, 70, 4
    qs3 = jax.random.normal(jax.random.PRNGKey(2), (B3, T3, A3), jnp.float32)
    out3 = jax.block_until_ready(vdn_mixer(qs3))
    ref3 = jnp.sum(qs3, axis=2, keepdims=True)
    assert out3.shape == (B3, T3, 1), out3.shape
    assert jnp.allclose(out3, ref3, atol=1e-5), "mismatch vs reference (multi-block)"

    print("KERNEL_OK")
</pallas_src>

<mosaic_0001>
module attributes {stable_mosaic.version = 11 : i64} {
  func.func @kernel(%arg0: i32, %arg1: memref<16x4xf32, #tpu.memory_space<vmem>>, %arg2: memref<16x1xf32, #tpu.memory_space<vmem>>) attributes {dimension_semantics = [#tpu.dimension_semantics<parallel>], iteration_bounds = array<i64: 1>, scalar_prefetch = 0 : i64, scratch_operands = 0 : i64, tpu.core_type = #tpu.core_type<tc>, window_params = [{transform_indices = @transform_0, window_bounds = array<i64: 16, 4>}, {transform_indices = @transform_1, window_bounds = array<i64: 16, 1>}]} {
    %c0 = arith.constant 0 : index
    %c0_0 = arith.constant 0 : index
    %0 = vector.load %arg1[%c0, %c0_0] : memref<16x4xf32, #tpu.memory_space<vmem>>, vector<16x4xf32>
    %cst = arith.constant dense<0.000000e+00> : vector<16xf32>
    %1 = vector.multi_reduction <add>, %0, %cst [1] : vector<16x4xf32> to vector<16xf32>
    %2 = vector.shape_cast %1 : vector<16xf32> to vector<16x1xf32>
    %c0_1 = arith.constant 0 : index
    %c0_2 = arith.constant 0 : index
    %3 = vector.load %arg2[%c0_1, %c0_2] : memref<16x1xf32, #tpu.memory_space<vmem>>, vector<16x1xf32>
    tpu.vector_store %arg2[%c0_1, %c0_2], %2 {strides = array<i32>} : memref<16x1xf32, #tpu.memory_space<vmem>>, vector<16x1xf32>,
    return
  }
  func.func @transform_0(%arg0: i32) -> (i32, i32) {
    %c0_i32 = arith.constant 0 : i32
    %c0_i32_0 = arith.constant 0 : i32
    return %arg0, %c0_i32 : i32, i32
  }
  func.func @transform_1(%arg0: i32) -> (i32, i32) {
    %c0_i32 = arith.constant 0 : i32
    %c0_i32_0 = arith.constant 0 : i32
    return %arg0, %c0_i32 : i32, i32
  }
}

</mosaic_0001>

<llo_original>
// kernel: tpu_custom_call.1
$region0: #{tpu_custom_call.1}
  #allocation0 [shape = 'u32[]', space=smem, size = 0x4, offset = 0x4, fixed_abs, tag = 'smem constant byte address 0x4 - core index']
  #allocation1 [shape = 'u32[72,128]{1,0:T(1,128)}', space=vmem, size = 0x9000, scoped, tag = 'internal scratch']
  %s0 = inlined_call_operand.vmem [shape: f32[16,4], index: 0, kind: input, shape index: {}]
  %s1 = inlined_call_operand.vmem [shape: f32[16,1], index: 1, kind: output, shape index: {}]
  %s2 = sld [smem:[#allocation0]]
  $region14: #{tpu_custom_call.1} parent=0
    _
  %s4 = ssub.s32 1, %s2
  %s5 = scalar_select 0, %s4, %s2
  // Predicated region
  $region2: #{tpu_custom_call.1} parent=0 // pred_check
    _
  $region3: #{tpu_custom_call.1} parent=0 // pred_check_branch
    %7 = sbr.rel (0) target = $region5
  $region4: #{tpu_custom_call.1} parent=0 // pred_region
    _
  $region5: #{tpu_custom_call.1} parent=0 // pred_fallthru
    _
  %v8 = vld [vmem:[%s0] sm:$0xff]
  %v9 = vld [vmem:[%s0 + $0x8] sm:$0xff]
  %vm10 = vcmask 31744
  %v11 = vsel %vm10, %v8, 0.0
  %12 = vadd.xlane.f32.xlu0 %v11
  %v13 = vpop.xlane.xlu0 %12
  %v14 = vsel %vm10, %v9, 0.0
  %15 = vadd.xlane.f32.xlu0 %v14
  %v16 = vpop.xlane.xlu0 %15
  %vm17 = vcmask 7168
  %18 = vst.msk [vmem:[%s1] sm:$0xff] %vm17, %v13
  %19 = vst.msk [vmem:[%s1 + $0x8] sm:$0xff] %vm17, %v16
  // Predicated region
  $region6: #{tpu_custom_call.1} parent=0 // pred_check
    _
  $region7: #{tpu_custom_call.1} parent=0 // pred_check_branch
    %21 = sbr.rel (0) target = $region9
  $region8: #{tpu_custom_call.1} parent=0 // pred_region
    _
  $region9: #{tpu_custom_call.1} parent=0 // pred_fallthru
    _
  // Predicated region
  $region10: #{tpu_custom_call.1} parent=0 // pred_check
    _
  $region11: #{tpu_custom_call.1} parent=0 // pred_check_branch
    %23 = sbr.rel (0) target = $region13
  $region12: #{tpu_custom_call.1} parent=0 // pred_region
    _
  $region13: #{tpu_custom_call.1} parent=0 // pred_fallthru
    _

</llo_original>
